<compile_context>
chip_gen: v7x
topology: tpu7x:2x2x1
jax: 0.10.0
libtpu: 0.0.40
codegen_flags: <defaults>
</compile_context>

<pallas_src>
import math
import jax
import jax.numpy as jnp
from jax.experimental import pallas as pl
from jax.experimental.pallas import tpu as pltpu


def _round_up(x, m):
    return ((x + m - 1) // m) * m


def _pad2d(x, rows, cols):
    pr = rows - x.shape[0]
    pc = cols - x.shape[1]
    if pr == 0 and pc == 0:
        return x
    return jnp.pad(x, ((0, pr), (0, pc)))


def _intra_order_kernel(adj_ref, inp_ref, w_ref, b_ref, out_ref, acc_ref):
    # Grid: (row-tile i [parallel], reduction-tile k over adj columns [arbitrary]).
    k = pl.program_id(1)

    @pl.when(k == 0)
    def _():
        acc_ref[...] = jnp.zeros_like(acc_ref)

    # acc += adj[i-block, k-block] @ inputs[k-block]   : (tm, tk) @ (tk, H)
    acc_ref[...] += jnp.dot(adj_ref[...], inp_ref[...],
                            preferred_element_type=jnp.float32)

    @pl.when(k == pl.num_programs(1) - 1)
    def _():
        # Projection + bias once per row tile: (tm, H) @ (H, Hp) + (1, Hp).
        # Hp is a multiple of 128 -> single lane-dense (unmasked) store.
        proj = jnp.dot(acc_ref[...].astype(w_ref.dtype), w_ref[...],
                       preferred_element_type=jnp.float32)
        out_ref[...] = (proj + b_ref[...]).astype(out_ref.dtype)


def intra_order(inputs, adj, weight, bias, *, use_bf16=False):
    """inputs: (N, H), adj: (N, N), weight: (H, H), bias: (H,) -> (N, H)."""
    n, h = inputs.shape
    assert adj.shape == (n, n)
    assert weight.shape == (h, h)
    assert bias.shape == (h,)

    # Only the output feature dim needs to be lane-dense (multiple of 128);
    # contraction dims stay at their natural sublane-aligned sizes.
    h_in = _round_up(h, 8)       # contraction dim of the projection
    h_out = _round_up(h, 128)    # lane-dense output / W-column / bias dim

    # Row / reduction tiling over adj. Small problems run as one full-extent
    # block (legal: block dims equal the full padded array dims). Large N uses
    # 512-wide tiles (multiple of 8 and 128); fits every generation's VMEM.
    if n <= 1024:
        n_pad = _round_up(n, 8)
        tile_m = tile_k = n_pad
    else:
        tile_m = tile_k = 512
        n_pad = _round_up(n, 512)

    cdt = jnp.bfloat16 if use_bf16 else jnp.float32   # matmul operand dtype
    f32 = jnp.float32

    # Pad only when actually needed (avoid a full padded copy of adj in HBM).
    adj_p = _pad2d(adj.astype(cdt), n_pad, n_pad)
    inp_p = _pad2d(inputs.astype(cdt), n_pad, h_in)
    w_p = _pad2d(weight.astype(cdt), h_in, h_out)
    b_p = _pad2d(bias.astype(f32).reshape(1, h), 1, h_out)

    grid_m, grid_k = n_pad // tile_m, n_pad // tile_k
    grid = (grid_m, grid_k)

    isz = jnp.dtype(cdt).itemsize
    cost = pl.CostEstimate(
        flops=2 * n_pad * n_pad * h_in + 2 * n_pad * h_in * h_out,
        bytes_accessed=(n_pad * n_pad * isz               # adj, read once
                        + grid_m * n_pad * h_in * isz     # inputs, re-read per row tile
                        + h_in * h_out * isz + h_out * 4  # weight + bias (resident)
                        + n_pad * h_out * 4),             # output
        transcendentals=0,
    )

    out_p = pl.pallas_call(
        _intra_order_kernel,
        out_shape=jax.ShapeDtypeStruct((n_pad, h_out), f32),
        grid_spec=pltpu.PrefetchScalarGridSpec(
            num_scalar_prefetch=0,
            grid=grid,
            in_specs=[
                # adj: (row-tile, reduction-tile)
                pl.BlockSpec((tile_m, tile_k), lambda i, k: (i, k)),
                # inputs: depends only on the reduction index k
                pl.BlockSpec((tile_k, h_in), lambda i, k: (k, 0)),
                # weight: resident across all grid steps
                pl.BlockSpec((h_in, h_out), lambda i, k: (0, 0)),
                # bias row: resident across all grid steps
                pl.BlockSpec((1, h_out), lambda i, k: (0, 0)),
            ],
            out_specs=pl.BlockSpec((tile_m, h_out), lambda i, k: (i, 0)),
            # Small f32 accumulator: (tile_m, H), not (tile_m, h_out).
            scratch_shapes=[pltpu.VMEM((tile_m, h_in), jnp.float32)],
        ),
        compiler_params=pltpu.CompilerParams(
            # Row tiles are independent -> shardable across TensorCores (v7x);
            # the adj contraction is the last, "arbitrary" grid axis.
            dimension_semantics=("parallel", "arbitrary"),
            vmem_limit_bytes=32 * 1024 * 1024,
        ),
        cost_estimate=cost,
    )(adj_p, inp_p, w_p, b_p)

    return out_p[:n, :h]


if __name__ == "__main__":
    N = 8          # number of nodes / sequence positions
    HIDDEN = 32    # hidden_dim

    key = jax.random.PRNGKey(0)
    k_in, k_adj, k_w, k_b = jax.random.split(key, 4)

    # Deterministic parameter init mirroring reset_parameters():
    # uniform(-stdv, stdv) with stdv = 1/sqrt(hidden_dim)
    stdv = 1.0 / math.sqrt(HIDDEN)
    weight = jax.random.uniform(
        k_w, (HIDDEN, HIDDEN), dtype=jnp.float32, minval=-stdv, maxval=stdv)
    bias = jax.random.uniform(
        k_b, (HIDDEN,), dtype=jnp.float32, minval=-stdv, maxval=stdv)

    # Example inputs (dense stand-ins for the sparse spmm operands)
    inputs = jax.random.normal(k_in, (N, HIDDEN), dtype=jnp.float32)
    adj = jax.random.uniform(k_adj, (N, N), dtype=jnp.float32)

    out = jax.jit(intra_order)(inputs, adj, weight, bias)
    jax.block_until_ready(out)

    # Reference check in plain JAX
    ref = adj @ (inputs @ weight) + bias
    assert out.shape == (N, HIDDEN)
    assert jnp.allclose(out, ref, atol=1e-4, rtol=1e-4)

    print("KERNEL_OK")
</pallas_src>

<mosaic_0001>
module attributes {stable_mosaic.version = 11 : i64} {
  func.func @_intra_order_kernel(%arg0: i32, %arg1: i32, %arg2: memref<8x8xf32, #tpu.memory_space<vmem>>, %arg3: memref<8x32xf32, #tpu.memory_space<vmem>>, %arg4: memref<32x128xf32, #tpu.memory_space<vmem>>, %arg5: memref<1x128xf32, #tpu.memory_space<vmem>>, %arg6: memref<8x128xf32, #tpu.memory_space<vmem>>, %arg7: memref<8x32xf32, #tpu.memory_space<vmem>>) attributes {dimension_semantics = [#tpu.dimension_semantics<parallel>, #tpu.dimension_semantics<arbitrary>], iteration_bounds = array<i64: 1, 1>, scalar_prefetch = 0 : i64, scratch_operands = 1 : i64, tpu.core_type = #tpu.core_type<tc>, window_params = [{transform_indices = @transform_0, window_bounds = array<i64: 8, 8>}, {transform_indices = @transform_1, window_bounds = array<i64: 8, 32>}, {pipeline_mode = #tpu.pipeline_mode<synchronous>, transform_indices = @transform_2, window_bounds = array<i64: 32, 128>}, {pipeline_mode = #tpu.pipeline_mode<synchronous>, transform_indices = @transform_3, window_bounds = array<i64: 1, 128>}, {transform_indices = @transform_4, window_bounds = array<i64: 8, 128>}]} {
    %c0_i32 = arith.constant 0 : i32
    %0 = arith.cmpi eq, %arg1, %c0_i32 : i32
    %1 = arith.extui %0 : i1 to i32
    %c0_i32_0 = arith.constant 0 : i32
    %2 = arith.cmpi ne, %1, %c0_i32_0 : i32
    scf.if %2 {
      %cst_10 = arith.constant 0.000000e+00 : f32
      %12 = vector.broadcast %cst_10 : f32 to vector<8x32xf32>
      %c0_11 = arith.constant 0 : index
      %c0_12 = arith.constant 0 : index
      %13 = vector.load %arg7[%c0_11, %c0_12] : memref<8x32xf32, #tpu.memory_space<vmem>>, vector<8x32xf32>
      tpu.vector_store %arg7[%c0_11, %c0_12], %12 {strides = array<i32>} : memref<8x32xf32, #tpu.memory_space<vmem>>, vector<8x32xf32>,
    } else {
    }
    %c0 = arith.constant 0 : index
    %c0_1 = arith.constant 0 : index
    %3 = vector.load %arg7[%c0, %c0_1] : memref<8x32xf32, #tpu.memory_space<vmem>>, vector<8x32xf32>
    %c0_2 = arith.constant 0 : index
    %c0_3 = arith.constant 0 : index
    %4 = vector.load %arg2[%c0_2, %c0_3] : memref<8x8xf32, #tpu.memory_space<vmem>>, vector<8x8xf32>
    %c0_4 = arith.constant 0 : index
    %c0_5 = arith.constant 0 : index
    %5 = vector.load %arg3[%c0_4, %c0_5] : memref<8x32xf32, #tpu.memory_space<vmem>>, vector<8x32xf32>
    %cst = arith.constant dense<0.000000e+00> : vector<8x32xf32>
    %6 = tpu.matmul %4, %5, %cst {dimension_numbers = #tpu.dot_dimension_numbers<[1], [0], [0], [1], [0, 0, 1, 1], [], []>} : vector<8x8xf32>, vector<8x32xf32>, vector<8x32xf32> -> vector<8x32xf32>
    %7 = arith.addf %3, %6 : vector<8x32xf32>
    %c0_6 = arith.constant 0 : index
    %c0_7 = arith.constant 0 : index
    %8 = vector.load %arg7[%c0_6, %c0_7] : memref<8x32xf32, #tpu.memory_space<vmem>>, vector<8x32xf32>
    tpu.vector_store %arg7[%c0_6, %c0_7], %7 {strides = array<i32>} : memref<8x32xf32, #tpu.memory_space<vmem>>, vector<8x32xf32>,
    %c0_i32_8 = arith.constant 0 : i32
    %9 = arith.cmpi eq, %arg1, %c0_i32_8 : i32
    %10 = arith.extui %9 : i1 to i32
    %c0_i32_9 = arith.constant 0 : i32
    %11 = arith.cmpi ne, %10, %c0_i32_9 : i32
    scf.if %11 {
      %c0_10 = arith.constant 0 : index
      %c0_11 = arith.constant 0 : index
      %12 = vector.load %arg7[%c0_10, %c0_11] : memref<8x32xf32, #tpu.memory_space<vmem>>, vector<8x32xf32>
      %c0_12 = arith.constant 0 : index
      %c0_13 = arith.constant 0 : index
      %13 = vector.load %arg4[%c0_12, %c0_13] : memref<32x128xf32, #tpu.memory_space<vmem>>, vector<32x128xf32>
      %cst_14 = arith.constant dense<0.000000e+00> : vector<8x128xf32>
      %14 = tpu.matmul %12, %13, %cst_14 {dimension_numbers = #tpu.dot_dimension_numbers<[1], [0], [0], [1], [0, 0, 1, 1], [], []>} : vector<8x32xf32>, vector<32x128xf32>, vector<8x128xf32> -> vector<8x128xf32>
      %c0_15 = arith.constant 0 : index
      %c0_16 = arith.constant 0 : index
      %15 = vector.load %arg5[%c0_15, %c0_16] : memref<1x128xf32, #tpu.memory_space<vmem>>, vector<1x128xf32>
      %16 = vector.broadcast %15 : vector<1x128xf32> to vector<8x128xf32>
      %17 = arith.addf %14, %16 : vector<8x128xf32>
      %c0_17 = arith.constant 0 : index
      %c0_18 = arith.constant 0 : index
      %18 = vector.load %arg6[%c0_17, %c0_18] : memref<8x128xf32, #tpu.memory_space<vmem>>, vector<8x128xf32>
      tpu.vector_store %arg6[%c0_17, %c0_18], %17 {strides = array<i32>} : memref<8x128xf32, #tpu.memory_space<vmem>>, vector<8x128xf32>,
    } else {
    }
    return
  }
  func.func @transform_0(%arg0: i32, %arg1: i32) -> (i32, i32) {
    %c0_i32 = arith.constant 0 : i32
    return %arg0, %arg1 : i32, i32
  }
  func.func @transform_1(%arg0: i32, %arg1: i32) -> (i32, i32) {
    %c0_i32 = arith.constant 0 : i32
    %c0_i32_0 = arith.constant 0 : i32
    return %arg1, %c0_i32 : i32, i32
  }
  func.func @transform_2(%arg0: i32, %arg1: i32) -> (i32, i32) {
    %c0_i32 = arith.constant 0 : i32
    %c0_i32_0 = arith.constant 0 : i32
    %c0_i32_1 = arith.constant 0 : i32
    return %c0_i32, %c0_i32_0 : i32, i32
  }
  func.func @transform_3(%arg0: i32, %arg1: i32) -> (i32, i32) {
    %c0_i32 = arith.constant 0 : i32
    %c0_i32_0 = arith.constant 0 : i32
    %c0_i32_1 = arith.constant 0 : i32
    return %c0_i32, %c0_i32_0 : i32, i32
  }
  func.func @transform_4(%arg0: i32, %arg1: i32) -> (i32, i32) {
    %c0_i32 = arith.constant 0 : i32
    %c0_i32_0 = arith.constant 0 : i32
    return %arg0, %c0_i32 : i32, i32
  }
}

</mosaic_0001>

<llo_original>
// kernel: intra_order.1
$region0: #{intra_order.1}
  #allocation0 [shape = 'u32[]', space=smem, size = 0x4, offset = 0x4, fixed_abs, tag = 'smem constant byte address 0x4 - core index']
  #allocation1 [shape = 'u32[144,128]{1,0:T(1,128)}', space=vmem, size = 0x12000, scoped, tag = 'internal scratch']
  #allocation2 [shape = 'f32[8,32]{1,0:T(8,128)}', space=vmem, size = 0x1000, scoped, tag = 'scratch operand']
  %s0 = inlined_call_operand.vmem [shape: f32[8,8], index: 0, kind: input, shape index: {}]
  %s1 = inlined_call_operand.vmem [shape: f32[8,32], index: 1, kind: input, shape index: {}]
  %s2 = inlined_call_operand.vmem [shape: f32[32,128], index: 2, kind: input, shape index: {}]
  %s3 = inlined_call_operand.vmem [shape: f32[1,128], index: 3, kind: input, shape index: {}]
  %s4 = inlined_call_operand.hbm [shape: f32[8,128], index: 4, kind: output, shape index: {}]
  %s5 = sld [smem:[#allocation0]]
  $region34: #{intra_order.1} parent=0
    _
  %s7 = ssub.s32 1, %s5
  %s8 = scalar_select 0, %s7, %s5
  $region1: #{intra_order.1} parent=0
    #allocation3 [shape = 'u8[4096]{0}', space=vmem, size = 0x1000, scoped, tag = 'output window, operand 0, single buffered']
    #allocation4 [shape = 's32[1]{0}', space=sflag, size = 0x4, scoped, tag = 'scoped memory for intra_order.1']
    %9 = vsyncpa [#allocation4], 0
    // Predicated region
    $region2: #{intra_order.1} parent=1 // pred_check
      _
    $region3: #{intra_order.1} parent=1 // pred_check_branch
      %11 = sbr.rel (0) target = $region5
    $region4: #{intra_order.1} parent=1 // pred_region
      _
    $region5: #{intra_order.1} parent=1 // pred_fallthru
      _
    // Predicated region
    $region6: #{intra_order.1} parent=1 // pred_check
      _
    $region7: #{intra_order.1} parent=1 // pred_check_branch
      %13 = sbr.rel (0) target = $region9
    $region8: #{intra_order.1} parent=1 // pred_region
      _
    $region9: #{intra_order.1} parent=1 // pred_fallthru
      _
    // Predicated region
    $region10: #{intra_order.1} parent=1 // pred_check
      _
    $region11: #{intra_order.1} parent=1 // pred_check_branch
      %15 = sbr.rel (0) target = $region13
    $region12: #{intra_order.1} parent=1 // pred_region
      _
    $region13: #{intra_order.1} parent=1 // pred_fallthru
      _
    // Predicated region
    $region14: #{intra_order.1} parent=1 // pred_check
      _
    $region15: #{intra_order.1} parent=1 // pred_check_branch
      %17 = sbr.rel (0) target = $region17
    $region16: #{intra_order.1} parent=1 // pred_region
      _
    $region17: #{intra_order.1} parent=1 // pred_fallthru
      _
    %p18 = scmp.eq.s32.totalorder 0, 0
    // Predicated region
    $region18: #{intra_order.1} parent=1 // pred_check
      %p19 = pneg %p18
    $region19: #{intra_order.1} parent=1 // pred_check_branch
      %21 = sbr.rel (%p19) target = $region21
    $region20: #{intra_order.1} parent=1 // pred_region
      %vm22 = vcmask 261120
      %23 = vst.msk [vmem:[#allocation2] sm:$0xff] %vm22, 0.0
    $region21: #{intra_order.1} parent=1 // pred_fallthru
      _
    %v24 = vld [vmem:[#allocation2] sm:$0xff]
    %v25 = vld [vmem:[%s0] sm:$0xff]
    %v26 = vld [vmem:[%s1] sm:$0xff]
    %vm27 = vcmask 64512
    %v29 = vsel %vm27, %v25, 0
    %31 = vmatprep.subr.mxu0 0.0
    %32 = vmatpush1.msra.mxu0 %v26
    %33 = vmatprep.subr.mxu0 0.0
    %34 = vmatpush1.msra.mxu0 0.0
    %35 = vmatprep.subr.mxu0 0.0
    %36 = vmatpush1.msra.mxu0 0.0
    %37 = vmatprep.subr.mxu0 0.0
    %38 = vmatpush1.msra.mxu0 0.0
    %39 = vmatprep.subr.mxu0 0.0
    %40 = vmatpush1.msra.mxu0 0.0
    %41 = vmatprep.subr.mxu0 0.0
    %42 = vmatpush1.msra.mxu0 0.0
    %43 = vmatprep.subr.mxu0 0.0
    %44 = vmatpush1.msra.mxu0 0.0
    %45 = vmatprep.subr.mxu0 0.0
    %46 = vmatpush1.msra.mxu0 0.0
    %47 = vmatprep.subr.mxu0 0.0
    %48 = vmatpush1.msra.mxu0 0.0
    %49 = vmatprep.subr.mxu0 0.0
    %50 = vmatpush1.msra.mxu0 0.0
    %51 = vmatprep.subr.mxu0 0.0
    %52 = vmatpush1.msra.mxu0 0.0
    %53 = vmatprep.subr.mxu0 0.0
    %54 = vmatpush1.msra.mxu0 0.0
    %55 = vmatprep.subr.mxu0 0.0
    %56 = vmatpush1.msra.mxu0 0.0
    %57 = vmatprep.subr.mxu0 0.0
    %58 = vmatpush1.msra.mxu0 0.0
    %59 = vmatprep.subr.mxu0 0.0
    %60 = vmatpush1.msra.mxu0 0.0
    %61 = vmatprep.subr.mxu0 0.0
    %62 = vmatpush1.msra.mxu0 0.0
    %63 = vmatprep.subr.mxu0 0.0
    %64 = vmatpush1.msra.mxu0 0.0
    %65 = vmatprep.subr.mxu0 0.0
    %66 = vmatpush1.msra.mxu0 0.0
    %67 = vmatprep.subr.mxu0 0.0
    %68 = vmatpush1.msra.mxu0 0.0
    %69 = vmatprep.subr.mxu0 0.0
    %70 = vmatpush1.msra.mxu0 0.0
    %71 = vmatprep.subr.mxu0 0.0
    %72 = vmatpush1.msra.mxu0 0.0
    %73 = vmatprep.subr.mxu0 0.0
    %74 = vmatpush1.msra.mxu0 0.0
    %75 = vmatprep.subr.mxu0 0.0
    %76 = vmatpush1.msra.mxu0 0.0
    %77 = vmatprep.subr.mxu0 0.0
    %78 = vmatpush1.msra.mxu0 0.0
    %79 = vmatprep.subr.mxu0 0.0
    %80 = vmatpush1.msra.mxu0 0.0
    %81 = vmatprep.subr.mxu0 0.0
    %82 = vmatpush1.msra.mxu0 0.0
    %83 = vmatprep.subr.mxu0 0.0
    %84 = vmatpush1.msra.mxu0 0.0
    %85 = vmatprep.subr.mxu0 0.0
    %86 = vmatpush1.msra.mxu0 0.0
    %87 = vmatprep.subr.mxu0 0.0
    %88 = vmatpush1.msra.mxu0 0.0
    %89 = vmatprep.subr.mxu0 0.0
    %90 = vmatpush1.msra.mxu0 0.0
    %91 = vmatprep.subr.mxu0 0.0
    %92 = vmatpush1.msra.mxu0 0.0
    %93 = vmatprep.subr.mxu0 0.0
    %94 = vmatpush1.msra.mxu0 0.0
    %95 = vmatprep.mubr.f32.mxu0 0.0
    %96 = vmatmul.mubr.f32.gmra.mrb[0].mxu0 %v29
    %v97 = vpop.f32.mrb[0].mxu0
    %v98 = vadd.f32 0.0, %v97
    %v99 = vpop.f32.mrb[0].mxu0
    %100 = vdwg.mxu0
    %v101 = vadd.f32 %v24, %v98
    %vm102 = vcmask 261120
    %103 = vst.msk [vmem:[#allocation2] sm:$0xff] %vm102, %v101
    // Predicated region
    $region22: #{intra_order.1} parent=1 // pred_check
      %p104 = pneg %p18
    $region23: #{intra_order.1} parent=1 // pred_check_branch
      %106 = sbr.rel (%p104) target = $region25
    $region24: #{intra_order.1} parent=1 // pred_region
      %v107 = vld [vmem:[#allocation2] sm:$0xff]
      %v108 = vld [vmem:[%s2] sm:$0xff]
      %v109 = vld [vmem:[%s2 + $0x8] sm:$0xff]
      %v110 = vld [vmem:[%s2 + $0x10] sm:$0xff]
      %v111 = vld [vmem:[%s2 + $0x18] sm:$0xff]
      %v112 = vld [vmem:[%s3] sm:$0x1]
      %v114 = vlaneseq
      %v115 = vshrl.u32 %v114, 7
      %v116 = vsub.s32 0, %v115
      %v117 = vrot.slane %v112, %v116
      %v120 = vsel %vm102, %v107, 0
      %122 = vmatprep.subr.mxu0 0.0
      %123 = vmatpush1.msra.mxu0 %v108
      %124 = vmatprep.subr.mxu0 0.0
      %125 = vmatpush1.msra.mxu0 %v109
      %126 = vmatprep.subr.mxu0 0.0
      %127 = vmatpush1.msra.mxu0 %v110
      %128 = vmatprep.subr.mxu0 0.0
      %129 = vmatpush1.msra.mxu0 %v111
      %130 = vmatprep.subr.mxu0 0.0
      %131 = vmatpush1.msra.mxu0 0.0
      %132 = vmatprep.subr.mxu0 0.0
      %133 = vmatpush1.msra.mxu0 0.0
      %134 = vmatprep.subr.mxu0 0.0
      %135 = vmatpush1.msra.mxu0 0.0
      %136 = vmatprep.subr.mxu0 0.0
      %137 = vmatpush1.msra.mxu0 0.0
      %138 = vmatprep.subr.mxu0 0.0
      %139 = vmatpush1.msra.mxu0 0.0
      %140 = vmatprep.subr.mxu0 0.0
      %141 = vmatpush1.msra.mxu0 0.0
      %142 = vmatprep.subr.mxu0 0.0
      %143 = vmatpush1.msra.mxu0 0.0
      %144 = vmatprep.subr.mxu0 0.0
      %145 = vmatpush1.msra.mxu0 0.0
      %146 = vmatprep.subr.mxu0 0.0
      %147 = vmatpush1.msra.mxu0 0.0
      %148 = vmatprep.subr.mxu0 0.0
      %149 = vmatpush1.msra.mxu0 0.0
      %150 = vmatprep.subr.mxu0 0.0
      %151 = vmatpush1.msra.mxu0 0.0
      %152 = vmatprep.subr.mxu0 0.0
      %153 = vmatpush1.msra.mxu0 0.0
      %154 = vmatprep.subr.mxu0 0.0
      %155 = vmatpush1.msra.mxu0 0.0
      %156 = vmatprep.subr.mxu0 0.0
      %157 = vmatpush1.msra.mxu0 0.0
      %158 = vmatprep.subr.mxu0 0.0
      %159 = vmatpush1.msra.mxu0 0.0
      %160 = vmatprep.subr.mxu0 0.0
      %161 = vmatpush1.msra.mxu0 0.0
      %162 = vmatprep.subr.mxu0 0.0
      %163 = vmatpush1.msra.mxu0 0.0
      %164 = vmatprep.subr.mxu0 0.0
      %165 = vmatpush1.msra.mxu0 0.0
      %166 = vmatprep.subr.mxu0 0.0
      %167 = vmatpush1.msra.mxu0 0.0
      %168 = vmatprep.subr.mxu0 0.0
      %169 = vmatpush1.msra.mxu0 0.0
      %170 = vmatprep.subr.mxu0 0.0
      %171 = vmatpush1.msra.mxu0 0.0
      %172 = vmatprep.subr.mxu0 0.0
      %173 = vmatpush1.msra.mxu0 0.0
      %174 = vmatprep.subr.mxu0 0.0
      %175 = vmatpush1.msra.mxu0 0.0
      %176 = vmatprep.subr.mxu0 0.0
      %177 = vmatpush1.msra.mxu0 0.0
      %178 = vmatprep.subr.mxu0 0.0
      %179 = vmatpush1.msra.mxu0 0.0
      %180 = vmatprep.subr.mxu0 0.0
      %181 = vmatpush1.msra.mxu0 0.0
      %182 = vmatprep.subr.mxu0 0.0
      %183 = vmatpush1.msra.mxu0 0.0
      %184 = vmatprep.subr.mxu0 0.0
      %185 = vmatpush1.msra.mxu0 0.0
      %186 = vmatprep.mubr.f32.mxu0 0.0
      %187 = vmatmul.mubr.f32.gmra.mrb[0].mxu0 %v120
      %v188 = vpop.f32.mrb[0].mxu0
      %v189 = vadd.f32 %v117, %v188
      %v190 = vpop.f32.mrb[0].mxu0
      %191 = vdwg.mxu0
      %192 = vst [vmem:[#allocation3] sm:$0xff] %v189
    $region25: #{intra_order.1} parent=1 // pred_fallthru
      _
    // Predicated region
    $region26: #{intra_order.1} parent=1 // pred_check
      _
    $region27: #{intra_order.1} parent=1 // pred_check_branch
      %194 = sbr.rel (0) target = $region29
    $region28: #{intra_order.1} parent=1 // pred_region
      %s196 = ssub.s32 128, 128
      %197 = vsyncadd [#allocation4], %s196
      %s199 = sshll.u32 [#allocation3], 4
      %s200 = int_to_ptr.vmem [resolvable:$true] %s199
      %202 = dma.vmem_to_hbm [thread:$0]  %s200, 128, %s4, [#allocation4]
    $region29: #{intra_order.1} parent=1 // pred_fallthru
      _
    // Predicated region
    $region30: #{intra_order.1} parent=1 // pred_check
      _
    $region31: #{intra_order.1} parent=1 // pred_check_branch
      %204 = sbr.rel (0) target = $region33
    $region32: #{intra_order.1} parent=1 // pred_region
      %205 = dma.done [#allocation4], 128
    $region33: #{intra_order.1} parent=1 // pred_fallthru
      _
    %206 = vsyncpa [#allocation4], 1

</llo_original>
